<compile_context>
chip_gen: v7x
topology: tpu7x:2x2x1
jax: 0.10.0
libtpu: 0.0.40
codegen_flags: <defaults>
</compile_context>

<pallas_src>
import functools
import math

import jax
import jax.numpy as jnp
from jax.experimental import pallas as pl
from jax.experimental.pallas import tpu as pltpu

_LANE = 1024            # lane-dense last dim, multiple of 128
_MAX_BLOCK_ROWS = 512   # 512 * 1024 lanes * 4 B = 2 MiB f32 per block
_MIN_BLOCK_ROWS = 8     # sublane minimum for f32


def _adaptive_wing_kernel(y_pred_ref, y_ref, out_ref, *, alpha, omega,
                          epsilon, theta):
    # Compute in f32 regardless of I/O dtype.
    y_pred = y_pred_ref[...].astype(jnp.float32)
    y = y_ref[...].astype(jnp.float32)

    # Scalar constants, folded at trace time.
    log_r = math.log(theta / epsilon)       # log(r), r = theta / epsilon
    inv_r = epsilon / theta                 # 1 / r
    inv_eps = 1.0 / epsilon

    exp_term = alpha - y                    # (alpha - y)
    pow_ay = jnp.exp(exp_term * log_r)      # r^(alpha - y)   (single EUP exp)
    pow_ay_m1 = pow_ay * inv_r              # r^(alpha - y - 1) via a VPU mul

    A = (omega * inv_eps) * pl.reciprocal(1.0 + pow_ay, approx=True) \
        * exp_term * pow_ay_m1
    C = theta * A - omega * jnp.log1p(pow_ay)

    diff = jnp.abs(y - y_pred)
    # case1: |y - y_pred| < theta
    case1 = omega * jnp.log1p(jnp.power(diff * inv_eps, exp_term))
    # case2: |y - y_pred| >= theta
    case2 = A * diff - C

    out_ref[...] = jnp.where(diff < theta, case1, case2).astype(out_ref.dtype)


def _choose_block_rows(rows):
    """~2 MiB f32 blocks, but aim for >= 4 grid iterations when possible."""
    target = -(-rows // 4)                                  # ceil(rows / 4)
    target = -(-target // _MIN_BLOCK_ROWS) * _MIN_BLOCK_ROWS  # round up to 8
    return max(_MIN_BLOCK_ROWS, min(_MAX_BLOCK_ROWS, target))


def adaptive_wing_loss(y_pred, y, *, alpha=2.1, omega=14.0, epsilon=1.0,
                       theta=0.5):
    """Elementwise adaptive wing loss. Returns lossMat with same shape/dtype."""
    assert y_pred.shape == y.shape
    orig_shape = y_pred.shape
    out_dtype = y_pred.dtype

    n = int(y_pred.size)
    rows = -(-n // _LANE)                      # ceil(n / LANE)
    block_rows = _choose_block_rows(rows)
    n_blocks = -(-rows // block_rows)
    rows_padded = n_blocks * block_rows
    n_padded = rows_padded * _LANE

    yp_flat = y_pred.reshape(-1)
    y_flat = y.reshape(-1)
    if n_padded != n:
        pad = n_padded - n
        # Zero padding is benign: diff = 0 < theta -> case1 evaluates to a
        # finite 0; the padded tail is sliced off below anyway.
        yp_flat = jnp.pad(yp_flat, (0, pad))
        y_flat = jnp.pad(y_flat, (0, pad))

    yp2d = yp_flat.reshape(rows_padded, _LANE)
    y2d = y_flat.reshape(rows_padded, _LANE)

    kernel = functools.partial(
        _adaptive_wing_kernel,
        alpha=float(alpha), omega=float(omega),
        epsilon=float(epsilon), theta=float(theta))

    out2d = pl.pallas_call(
        kernel,
        out_shape=jax.ShapeDtypeStruct((rows_padded, _LANE), out_dtype),
        grid_spec=pltpu.PrefetchScalarGridSpec(
            num_scalar_prefetch=0,
            grid=(n_blocks,),
            in_specs=[
                pl.BlockSpec((block_rows, _LANE), lambda i: (i, 0)),
                pl.BlockSpec((block_rows, _LANE), lambda i: (i, 0)),
            ],
            out_specs=pl.BlockSpec((block_rows, _LANE), lambda i: (i, 0)),
        ),
        compiler_params=pltpu.CompilerParams(
            dimension_semantics=("parallel",),
            # 3 arrays x 2 pipeline buffers x <=2 MiB = <=12 MiB; 32 MiB limit
            # is safe on v5e/v6e (128 MiB phys) and v7x (64 MiB phys).
            vmem_limit_bytes=32 * 1024 * 1024,
        ),
    )(yp2d, y2d)

    out_flat = out2d.reshape(-1)
    if n_padded != n:
        out_flat = out_flat[:n]
    return out_flat.reshape(orig_shape)


def _reference(y_pred, y, alpha=2.1, omega=14.0, epsilon=1.0, theta=0.5):
    r = theta / epsilon
    A = omega * (1.0 / (1.0 + r ** (alpha - y))) * (alpha - y) \
        * r ** (alpha - y - 1.0) / epsilon
    C = theta * A - omega * jnp.log(1.0 + r ** (alpha - y))
    diff = jnp.abs(y - y_pred)
    case1 = omega * jnp.log(1.0 + jnp.abs((y - y_pred) / epsilon) ** (alpha - y))
    case2 = A * diff - C
    return jnp.where(diff < theta, case1, case2)


if __name__ == "__main__":
    key = jax.random.PRNGKey(0)
    k1, k2 = jax.random.split(key)
    # Heatmap-style inputs in [0, 1], shape NCHW = (2, 4, 16, 16).
    y_pred = jax.random.uniform(k1, (2, 4, 16, 16), dtype=jnp.float32)
    y = jax.random.uniform(k2, (2, 4, 16, 16), dtype=jnp.float32)

    loss = adaptive_wing_loss(y_pred, y)
    loss = jax.block_until_ready(loss)

    ref = _reference(y_pred, y)
    assert loss.shape == y_pred.shape and loss.dtype == y_pred.dtype
    # Tolerance accounts for the approximate EUP reciprocal used for
    # 1 / (1 + r^(alpha - y)); everything else matches to f32 precision.
    assert jnp.allclose(loss, ref, atol=2e-3, rtol=2e-3), "mismatch vs reference"
    print("KERNEL_OK")
</pallas_src>

<mosaic_0001>
module attributes {stable_mosaic.version = 11 : i64} {
  func.func @_adaptive_wing_kernel(%arg0: i32, %arg1: memref<8x1024xf32, #tpu.memory_space<vmem>>, %arg2: memref<8x1024xf32, #tpu.memory_space<vmem>>, %arg3: memref<8x1024xf32, #tpu.memory_space<vmem>>) attributes {dimension_semantics = [#tpu.dimension_semantics<parallel>], iteration_bounds = array<i64: 1>, scalar_prefetch = 0 : i64, scratch_operands = 0 : i64, tpu.core_type = #tpu.core_type<tc>, window_params = [{transform_indices = @transform_0, window_bounds = array<i64: 8, 1024>}, {transform_indices = @transform_1, window_bounds = array<i64: 8, 1024>}, {transform_indices = @transform_2, window_bounds = array<i64: 8, 1024>}]} {
    %c0 = arith.constant 0 : index
    %c0_0 = arith.constant 0 : index
    %0 = vector.load %arg1[%c0, %c0_0] : memref<8x1024xf32, #tpu.memory_space<vmem>>, vector<8x1024xf32>
    %c0_1 = arith.constant 0 : index
    %c0_2 = arith.constant 0 : index
    %1 = vector.load %arg2[%c0_1, %c0_2] : memref<8x1024xf32, #tpu.memory_space<vmem>>, vector<8x1024xf32>
    %cst = arith.constant 2.100000e+00 : f32
    %2 = vector.broadcast %cst : f32 to vector<8x1024xf32>
    %3 = arith.subf %2, %1 : vector<8x1024xf32>
    %cst_3 = arith.constant -0.693147182 : f32
    %4 = vector.broadcast %cst_3 : f32 to vector<8x1024xf32>
    %5 = arith.mulf %3, %4 : vector<8x1024xf32>
    %6 = math.exp %5 : vector<8x1024xf32>
    %cst_4 = arith.constant 2.000000e+00 : f32
    %7 = vector.broadcast %cst_4 : f32 to vector<8x1024xf32>
    %8 = arith.mulf %6, %7 : vector<8x1024xf32>
    %cst_5 = arith.constant 1.000000e+00 : f32
    %9 = vector.broadcast %cst_5 : f32 to vector<8x1024xf32>
    %10 = arith.addf %9, %6 : vector<8x1024xf32>
    %11 = tpu.reciprocal %10 {approx = true} : vector<8x1024xf32> -> vector<8x1024xf32>
    %cst_6 = arith.constant 1.400000e+01 : f32
    %12 = vector.broadcast %cst_6 : f32 to vector<8x1024xf32>
    %13 = arith.mulf %12, %11 : vector<8x1024xf32>
    %14 = arith.mulf %13, %3 : vector<8x1024xf32>
    %15 = arith.mulf %14, %8 : vector<8x1024xf32>
    %cst_7 = arith.constant 5.000000e-01 : f32
    %16 = vector.broadcast %cst_7 : f32 to vector<8x1024xf32>
    %17 = arith.mulf %16, %15 : vector<8x1024xf32>
    %18 = math.log1p %6 : vector<8x1024xf32>
    %cst_8 = arith.constant 1.400000e+01 : f32
    %19 = vector.broadcast %cst_8 : f32 to vector<8x1024xf32>
    %20 = arith.mulf %19, %18 : vector<8x1024xf32>
    %21 = arith.subf %17, %20 : vector<8x1024xf32>
    %22 = arith.subf %1, %0 : vector<8x1024xf32>
    %23 = math.absf %22 : vector<8x1024xf32>
    %cst_9 = arith.constant 1.000000e+00 : f32
    %24 = vector.broadcast %cst_9 : f32 to vector<8x1024xf32>
    %25 = arith.mulf %23, %24 : vector<8x1024xf32>
    %26 = math.powf %25, %3 : vector<8x1024xf32>
    %27 = math.log1p %26 : vector<8x1024xf32>
    %cst_10 = arith.constant 1.400000e+01 : f32
    %28 = vector.broadcast %cst_10 : f32 to vector<8x1024xf32>
    %29 = arith.mulf %28, %27 : vector<8x1024xf32>
    %30 = arith.mulf %15, %23 : vector<8x1024xf32>
    %31 = arith.subf %30, %21 : vector<8x1024xf32>
    %cst_11 = arith.constant 5.000000e-01 : f32
    %32 = vector.broadcast %cst_11 : f32 to vector<8x1024xf32>
    %33 = arith.cmpf olt, %23, %32 : vector<8x1024xf32>
    %34 = arith.select %33, %29, %31 : vector<8x1024xi1>, vector<8x1024xf32>
    %c0_12 = arith.constant 0 : index
    %c0_13 = arith.constant 0 : index
    %35 = vector.load %arg3[%c0_12, %c0_13] : memref<8x1024xf32, #tpu.memory_space<vmem>>, vector<8x1024xf32>
    tpu.vector_store %arg3[%c0_12, %c0_13], %34 {strides = array<i32>} : memref<8x1024xf32, #tpu.memory_space<vmem>>, vector<8x1024xf32>,
    return
  }
  func.func @transform_0(%arg0: i32) -> (i32, i32) {
    %c0_i32 = arith.constant 0 : i32
    %c0_i32_0 = arith.constant 0 : i32
    return %arg0, %c0_i32 : i32, i32
  }
  func.func @transform_1(%arg0: i32) -> (i32, i32) {
    %c0_i32 = arith.constant 0 : i32
    %c0_i32_0 = arith.constant 0 : i32
    return %arg0, %c0_i32 : i32, i32
  }
  func.func @transform_2(%arg0: i32) -> (i32, i32) {
    %c0_i32 = arith.constant 0 : i32
    %c0_i32_0 = arith.constant 0 : i32
    return %arg0, %c0_i32 : i32, i32
  }
}

</mosaic_0001>

<llo_original>
// kernel: tpu_custom_call.1
$region0: #{tpu_custom_call.1}
  #allocation0 [shape = 'u32[]', space=smem, size = 0x4, offset = 0x4, fixed_abs, tag = 'smem constant byte address 0x4 - core index']
  #allocation1 [shape = 'u32[144,128]{1,0:T(1,128)}', space=vmem, size = 0x12000, scoped, tag = 'internal scratch']
  %s0 = inlined_call_operand.hbm [shape: f32[8,1024], index: 0, kind: input, shape index: {}]
  %s1 = inlined_call_operand.hbm [shape: f32[8,1024], index: 1, kind: input, shape index: {}]
  %s2 = inlined_call_operand.hbm [shape: f32[8,1024], index: 2, kind: output, shape index: {}]
  %s3 = sld [smem:[#allocation0]]
  $region26: #{tpu_custom_call.1} parent=0
    _
  %s5 = ssub.s32 1, %s3
  %s6 = scalar_select 0, %s5, %s3
  $region1: #{tpu_custom_call.1} parent=0
    #allocation2 [shape = 'u8[32768]{0}', space=vmem, size = 0x8000, scoped, tag = 'input window, operand 0, single buffered']
    #allocation3 [shape = 's32[1]{0}', space=sflag, size = 0x4, scoped, tag = 'scoped memory for tpu_custom_call.1']
    #allocation4 [shape = 's32[1]{0}', space=sflag, size = 0x4, scoped, tag = 'scoped memory for tpu_custom_call.1']
    #allocation5 [shape = 'u8[32768]{0}', space=vmem, size = 0x8000, scoped, tag = 'input window, operand 1, single buffered']
    #allocation6 [shape = 's32[1]{0}', space=sflag, size = 0x4, scoped, tag = 'scoped memory for tpu_custom_call.1']
    #allocation7 [shape = 'u8[32768]{0}', space=vmem, size = 0x8000, scoped, tag = 'output window, operand 0, single buffered']
    %7 = vsyncpa [#allocation3], 0
    %8 = vsyncpa [#allocation6], 0
    %9 = vsyncpa [#allocation4], 0
    // Predicated region
    $region2: #{tpu_custom_call.1} parent=1 // pred_check
      _
    $region3: #{tpu_custom_call.1} parent=1 // pred_check_branch
      %11 = sbr.rel (0) target = $region5
    $region4: #{tpu_custom_call.1} parent=1 // pred_region
      %s13 = ssub.s32 1024, 1024
      %14 = vsyncadd [#allocation3], %s13
      %s16 = sshll.u32 [#allocation2], 4
      %s17 = int_to_ptr.vmem [resolvable:$true] %s16
      %19 = dma.hbm_to_vmem [thread:$0]  %s0, 1024, %s17, [#allocation3]
    $region5: #{tpu_custom_call.1} parent=1 // pred_fallthru
      _
    // Predicated region
    $region6: #{tpu_custom_call.1} parent=1 // pred_check
      _
    $region7: #{tpu_custom_call.1} parent=1 // pred_check_branch
      %21 = sbr.rel (0) target = $region9
    $region8: #{tpu_custom_call.1} parent=1 // pred_region
      %s23 = ssub.s32 1024, 1024
      %24 = vsyncadd [#allocation6], %s23
      %s26 = sshll.u32 [#allocation5], 4
      %s27 = int_to_ptr.vmem [resolvable:$true] %s26
      %29 = dma.hbm_to_vmem [thread:$0]  %s1, 1024, %s27, [#allocation6]
    $region9: #{tpu_custom_call.1} parent=1 // pred_fallthru
      _
    // Predicated region
    $region10: #{tpu_custom_call.1} parent=1 // pred_check
      _
    $region11: #{tpu_custom_call.1} parent=1 // pred_check_branch
      %31 = sbr.rel (0) target = $region13
    $region12: #{tpu_custom_call.1} parent=1 // pred_region
      %32 = dma.done [#allocation3], 1024
    $region13: #{tpu_custom_call.1} parent=1 // pred_fallthru
      _
    // Predicated region
    $region14: #{tpu_custom_call.1} parent=1 // pred_check
      _
    $region15: #{tpu_custom_call.1} parent=1 // pred_check_branch
      %34 = sbr.rel (0) target = $region17
    $region16: #{tpu_custom_call.1} parent=1 // pred_region
      %35 = dma.done [#allocation6], 1024
    $region17: #{tpu_custom_call.1} parent=1 // pred_fallthru
      _
    %v36 = vld [vmem:[#allocation2] sm:$0xff]
    %v37 = vld [vmem:[#allocation2 + $0x8] sm:$0xff]
    %v38 = vld [vmem:[#allocation2 + $0x10] sm:$0xff]
    %v39 = vld [vmem:[#allocation2 + $0x18] sm:$0xff]
    %v40 = vld [vmem:[#allocation2 + $0x20] sm:$0xff]
    %v41 = vld [vmem:[#allocation2 + $0x28] sm:$0xff]
    %v42 = vld [vmem:[#allocation2 + $0x30] sm:$0xff]
    %v43 = vld [vmem:[#allocation2 + $0x38] sm:$0xff]
    %v44 = vld [vmem:[#allocation5] sm:$0xff]
    %v45 = vld [vmem:[#allocation5 + $0x8] sm:$0xff]
    %v46 = vld [vmem:[#allocation5 + $0x10] sm:$0xff]
    %v47 = vld [vmem:[#allocation5 + $0x18] sm:$0xff]
    %v48 = vld [vmem:[#allocation5 + $0x20] sm:$0xff]
    %v49 = vld [vmem:[#allocation5 + $0x28] sm:$0xff]
    %v50 = vld [vmem:[#allocation5 + $0x30] sm:$0xff]
    %v51 = vld [vmem:[#allocation5 + $0x38] sm:$0xff]
    %v52 = vsub.f32 2.1, %v44
    %v53 = vsub.f32 2.1, %v45
    %v54 = vsub.f32 2.1, %v46
    %v55 = vsub.f32 2.1, %v47
    %v56 = vsub.f32 2.1, %v48
    %v57 = vsub.f32 2.1, %v49
    %v58 = vsub.f32 2.1, %v50
    %v59 = vsub.f32 2.1, %v51
    %v60 = vmul.f32 %v52, -0.6931472
    %v61 = vmul.f32 %v53, -0.6931472
    %v62 = vmul.f32 %v54, -0.6931472
    %v63 = vmul.f32 %v55, -0.6931472
    %v64 = vmul.f32 %v56, -0.6931472
    %v65 = vmul.f32 %v57, -0.6931472
    %v66 = vmul.f32 %v58, -0.6931472
    %v67 = vmul.f32 %v59, -0.6931472
    %v68 = vmul.f32 %v60, 1.442695
    %v69 = vpow.pop %v68
    %v70 = vmul.f32 %v61, 1.442695
    %v71 = vpow.pop %v70
    %v72 = vmul.f32 %v62, 1.442695
    %v73 = vpow.pop %v72
    %v74 = vmul.f32 %v63, 1.442695
    %v75 = vpow.pop %v74
    %v76 = vmul.f32 %v64, 1.442695
    %v77 = vpow.pop %v76
    %v78 = vmul.f32 %v65, 1.442695
    %v79 = vpow.pop %v78
    %v80 = vmul.f32 %v66, 1.442695
    %v81 = vpow.pop %v80
    %v82 = vmul.f32 %v67, 1.442695
    %v83 = vpow.pop %v82
    %v84 = vmul.f32 %v69, 2.0
    %v85 = vmul.f32 %v71, 2.0
    %v86 = vmul.f32 %v73, 2.0
    %v87 = vmul.f32 %v75, 2.0
    %v88 = vmul.f32 %v77, 2.0
    %v89 = vmul.f32 %v79, 2.0
    %v90 = vmul.f32 %v81, 2.0
    %v91 = vmul.f32 %v83, 2.0
    %v92 = vadd.f32 %v69, 1.0
    %v93 = vadd.f32 %v71, 1.0
    %v94 = vadd.f32 %v73, 1.0
    %v95 = vadd.f32 %v75, 1.0
    %v96 = vadd.f32 %v77, 1.0
    %v97 = vadd.f32 %v79, 1.0
    %v98 = vadd.f32 %v81, 1.0
    %v99 = vadd.f32 %v83, 1.0
    %v100 = vrcp.pop %v92
    %v101 = vrcp.pop %v93
    %v102 = vrcp.pop %v94
    %v103 = vrcp.pop %v95
    %v104 = vrcp.pop %v96
    %v105 = vrcp.pop %v97
    %v106 = vrcp.pop %v98
    %v107 = vrcp.pop %v99
    %v108 = vmul.f32 %v100, 14.0
    %v109 = vmul.f32 %v101, 14.0
    %v110 = vmul.f32 %v102, 14.0
    %v111 = vmul.f32 %v103, 14.0
    %v112 = vmul.f32 %v104, 14.0
    %v113 = vmul.f32 %v105, 14.0
    %v114 = vmul.f32 %v106, 14.0
    %v115 = vmul.f32 %v107, 14.0
    %v116 = vmul.f32 %v108, %v52
    %v117 = vmul.f32 %v109, %v53
    %v118 = vmul.f32 %v110, %v54
    %v119 = vmul.f32 %v111, %v55
    %v120 = vmul.f32 %v112, %v56
    %v121 = vmul.f32 %v113, %v57
    %v122 = vmul.f32 %v114, %v58
    %v123 = vmul.f32 %v115, %v59
    %v124 = vmul.f32 %v116, %v84
    %v125 = vmul.f32 %v117, %v85
    %v126 = vmul.f32 %v118, %v86
    %v127 = vmul.f32 %v119, %v87
    %v128 = vmul.f32 %v120, %v88
    %v129 = vmul.f32 %v121, %v89
    %v130 = vmul.f32 %v122, %v90
    %v131 = vmul.f32 %v123, %v91
    %v132 = vmul.f32 %v124, 0.5
    %v133 = vmul.f32 %v125, 0.5
    %v134 = vmul.f32 %v126, 0.5
    %v135 = vmul.f32 %v127, 0.5
    %v136 = vmul.f32 %v128, 0.5
    %v137 = vmul.f32 %v129, 0.5
    %v138 = vmul.f32 %v130, 0.5
    %v139 = vmul.f32 %v131, 0.5
    %v140 = vadd.f32 %v69, 1.0
    %v141 = vlog2.pop %v140
    %v142 = vmul.f32 %v141, 0.6931472
    %v143 = vmul.f32 -0.5, %v69
    %v144 = vadd.f32 %v143, 1.0
    %v145 = vmul.f32 %v144, %v69
    %v146 = vand.u32 2147483647, %v69
    %vm147 = vcmp.lt.f32.partialorder %v146, 0.0004427343
    %v148 = vsel %vm147, %v145, %v142
    %v149 = vadd.f32 %v71, 1.0
    %v150 = vlog2.pop %v149
    %v151 = vmul.f32 %v150, 0.6931472
    %v152 = vmul.f32 -0.5, %v71
    %v153 = vadd.f32 %v152, 1.0
    %v154 = vmul.f32 %v153, %v71
    %v155 = vand.u32 2147483647, %v71
    %vm156 = vcmp.lt.f32.partialorder %v155, 0.0004427343
    %v157 = vsel %vm156, %v154, %v151
    %v158 = vadd.f32 %v73, 1.0
    %v159 = vlog2.pop %v158
    %v160 = vmul.f32 %v159, 0.6931472
    %v161 = vmul.f32 -0.5, %v73
    %v162 = vadd.f32 %v161, 1.0
    %v163 = vmul.f32 %v162, %v73
    %v164 = vand.u32 2147483647, %v73
    %vm165 = vcmp.lt.f32.partialorder %v164, 0.0004427343
    %v166 = vsel %vm165, %v163, %v160
    %v167 = vadd.f32 %v75, 1.0
    %v168 = vlog2.pop %v167
    %v169 = vmul.f32 %v168, 0.6931472
    %v170 = vmul.f32 -0.5, %v75
    %v171 = vadd.f32 %v170, 1.0
    %v172 = vmul.f32 %v171, %v75
    %v173 = vand.u32 2147483647, %v75
    %vm174 = vcmp.lt.f32.partialorder %v173, 0.0004427343
    %v175 = vsel %vm174, %v172, %v169
    %v176 = vadd.f32 %v77, 1.0
    %v177 = vlog2.pop %v176
    %v178 = vmul.f32 %v177, 0.6931472
    %v179 = vmul.f32 -0.5, %v77
    %v180 = vadd.f32 %v179, 1.0
    %v181 = vmul.f32 %v180, %v77
    %v182 = vand.u32 2147483647, %v77
    %vm183 = vcmp.lt.f32.partialorder %v182, 0.0004427343
    %v184 = vsel %vm183, %v181, %v178
    %v185 = vadd.f32 %v79, 1.0
    %v186 = vlog2.pop %v185
    %v187 = vmul.f32 %v186, 0.6931472
    %v188 = vmul.f32 -0.5, %v79
    %v189 = vadd.f32 %v188, 1.0
    %v190 = vmul.f32 %v189, %v79
    %v191 = vand.u32 2147483647, %v79
    %vm192 = vcmp.lt.f32.partialorder %v191, 0.0004427343
    %v193 = vsel %vm192, %v190, %v187
    %v194 = vadd.f32 %v81, 1.0
    %v195 = vlog2.pop %v194
    %v196 = vmul.f32 %v195, 0.6931472
    %v197 = vmul.f32 -0.5, %v81
    %v198 = vadd.f32 %v197, 1.0
    %v199 = vmul.f32 %v198, %v81
    %v200 = vand.u32 2147483647, %v81
    %vm201 = vcmp.lt.f32.partialorder %v200, 0.0004427343
    %v202 = vsel %vm201, %v199, %v196
    %v203 = vadd.f32 %v83, 1.0
    %v204 = vlog2.pop %v203
    %v205 = vmul.f32 %v204, 0.6931472
    %v206 = vmul.f32 -0.5, %v83
    %v207 = vadd.f32 %v206, 1.0
    %v208 = vmul.f32 %v207, %v83
    %v209 = vand.u32 2147483647, %v83
    %vm210 = vcmp.lt.f32.partialorder %v209, 0.0004427343
    %v211 = vsel %vm210, %v208, %v205
    %v212 = vmul.f32 %v148, 14.0
    %v213 = vmul.f32 %v157, 14.0
    %v214 = vmul.f32 %v166, 14.0
    %v215 = vmul.f32 %v175, 14.0
    %v216 = vmul.f32 %v184, 14.0
    %v217 = vmul.f32 %v193, 14.0
    %v218 = vmul.f32 %v202, 14.0
    %v219 = vmul.f32 %v211, 14.0
    %v220 = vsub.f32 %v132, %v212
    %v221 = vsub.f32 %v133, %v213
    %v222 = vsub.f32 %v134, %v214
    %v223 = vsub.f32 %v135, %v215
    %v224 = vsub.f32 %v136, %v216
    %v225 = vsub.f32 %v137, %v217
    %v226 = vsub.f32 %v138, %v218
    %v227 = vsub.f32 %v139, %v219
    %v228 = vsub.f32 %v44, %v36
    %v229 = vsub.f32 %v45, %v37
    %v230 = vsub.f32 %v46, %v38
    %v231 = vsub.f32 %v47, %v39
    %v232 = vsub.f32 %v48, %v40
    %v233 = vsub.f32 %v49, %v41
    %v234 = vsub.f32 %v50, %v42
    %v235 = vsub.f32 %v51, %v43
    %v236 = vand.u32 2147483647, %v228
    %v237 = vand.u32 2147483647, %v229
    %v238 = vand.u32 2147483647, %v230
    %v239 = vand.u32 2147483647, %v231
    %v240 = vand.u32 2147483647, %v232
    %v241 = vand.u32 2147483647, %v233
    %v242 = vand.u32 2147483647, %v234
    %v243 = vand.u32 2147483647, %v235
    %v244 = vpow.f32 %v236, %v52
    %v245 = vpow.f32 %v237, %v53
    %v246 = vpow.f32 %v238, %v54
    %v247 = vpow.f32 %v239, %v55
    %v248 = vpow.f32 %v240, %v56
    %v249 = vpow.f32 %v241, %v57
    %v250 = vpow.f32 %v242, %v58
    %v251 = vpow.f32 %v243, %v59
    %v252 = vadd.f32 %v244, 1.0
    %v253 = vlog2.pop %v252
    %v254 = vmul.f32 %v253, 0.6931472
    %v255 = vmul.f32 -0.5, %v244
    %v256 = vadd.f32 %v255, 1.0
    %v257 = vmul.f32 %v256, %v244
    %v258 = vand.u32 2147483647, %v244
    %vm259 = vcmp.lt.f32.partialorder %v258, 0.0004427343
    %v260 = vsel %vm259, %v257, %v254
    %v261 = vadd.f32 %v245, 1.0
    %v262 = vlog2.pop %v261
    %v263 = vmul.f32 %v262, 0.6931472
    %v264 = vmul.f32 -0.5, %v245
    %v265 = vadd.f32 %v264, 1.0
    %v266 = vmul.f32 %v265, %v245
    %v267 = vand.u32 2147483647, %v245
    %vm268 = vcmp.lt.f32.partialorder %v267, 0.0004427343
    %v269 = vsel %vm268, %v266, %v263
    %v270 = vadd.f32 %v246, 1.0
    %v271 = vlog2.pop %v270
    %v272 = vmul.f32 %v271, 0.6931472
    %v273 = vmul.f32 -0.5, %v246
    %v274 = vadd.f32 %v273, 1.0
    %v275 = vmul.f32 %v274, %v246
    %v276 = vand.u32 2147483647, %v246
    %vm277 = vcmp.lt.f32.partialorder %v276, 0.0004427343
    %v278 = vsel %vm277, %v275, %v272
    %v279 = vadd.f32 %v247, 1.0
    %v280 = vlog2.pop %v279
    %v281 = vmul.f32 %v280, 0.6931472
    %v282 = vmul.f32 -0.5, %v247
    %v283 = vadd.f32 %v282, 1.0
    %v284 = vmul.f32 %v283, %v247
    %v285 = vand.u32 2147483647, %v247
    %vm286 = vcmp.lt.f32.partialorder %v285, 0.0004427343
    %v287 = vsel %vm286, %v284, %v281
    %v288 = vadd.f32 %v248, 1.0
    %v289 = vlog2.pop %v288
    %v290 = vmul.f32 %v289, 0.6931472
    %v291 = vmul.f32 -0.5, %v248
    %v292 = vadd.f32 %v291, 1.0
    %v293 = vmul.f32 %v292, %v248
    %v294 = vand.u32 2147483647, %v248
    %vm295 = vcmp.lt.f32.partialorder %v294, 0.0004427343
    %v296 = vsel %vm295, %v293, %v290
    %v297 = vadd.f32 %v249, 1.0
    %v298 = vlog2.pop %v297
    %v299 = vmul.f32 %v298, 0.6931472
    %v300 = vmul.f32 -0.5, %v249
    %v301 = vadd.f32 %v300, 1.0
    %v302 = vmul.f32 %v301, %v249
    %v303 = vand.u32 2147483647, %v249
    %vm304 = vcmp.lt.f32.partialorder %v303, 0.0004427343
    %v305 = vsel %vm304, %v302, %v299
    %v306 = vadd.f32 %v250, 1.0
    %v307 = vlog2.pop %v306
    %v308 = vmul.f32 %v307, 0.6931472
    %v309 = vmul.f32 -0.5, %v250
    %v310 = vadd.f32 %v309, 1.0
    %v311 = vmul.f32 %v310, %v250
    %v312 = vand.u32 2147483647, %v250
    %vm313 = vcmp.lt.f32.partialorder %v312, 0.0004427343
    %v314 = vsel %vm313, %v311, %v308
    %v315 = vadd.f32 %v251, 1.0
    %v316 = vlog2.pop %v315
    %v317 = vmul.f32 %v316, 0.6931472
    %v318 = vmul.f32 -0.5, %v251
    %v319 = vadd.f32 %v318, 1.0
    %v320 = vmul.f32 %v319, %v251
    %v321 = vand.u32 2147483647, %v251
    %vm322 = vcmp.lt.f32.partialorder %v321, 0.0004427343
    %v323 = vsel %vm322, %v320, %v317
    %v324 = vmul.f32 %v260, 14.0
    %v325 = vmul.f32 %v269, 14.0
    %v326 = vmul.f32 %v278, 14.0
    %v327 = vmul.f32 %v287, 14.0
    %v328 = vmul.f32 %v296, 14.0
    %v329 = vmul.f32 %v305, 14.0
    %v330 = vmul.f32 %v314, 14.0
    %v331 = vmul.f32 %v323, 14.0
    %v332 = vmul.f32 %v124, %v236
    %v333 = vmul.f32 %v125, %v237
    %v334 = vmul.f32 %v126, %v238
    %v335 = vmul.f32 %v127, %v239
    %v336 = vmul.f32 %v128, %v240
    %v337 = vmul.f32 %v129, %v241
    %v338 = vmul.f32 %v130, %v242
    %v339 = vmul.f32 %v131, %v243
    %v340 = vsub.f32 %v332, %v220
    %v341 = vsub.f32 %v333, %v221
    %v342 = vsub.f32 %v334, %v222
    %v343 = vsub.f32 %v335, %v223
    %v344 = vsub.f32 %v336, %v224
    %v345 = vsub.f32 %v337, %v225
    %v346 = vsub.f32 %v338, %v226
    %v347 = vsub.f32 %v339, %v227
    %vm348 = vcmp.lt.f32.partialorder %v236, 0.5
    %vm349 = vcmp.lt.f32.partialorder %v237, 0.5
    %vm350 = vcmp.lt.f32.partialorder %v238, 0.5
    %vm351 = vcmp.lt.f32.partialorder %v239, 0.5
    %vm352 = vcmp.lt.f32.partialorder %v240, 0.5
    %vm353 = vcmp.lt.f32.partialorder %v241, 0.5
    %vm354 = vcmp.lt.f32.partialorder %v242, 0.5
    %vm355 = vcmp.lt.f32.partialorder %v243, 0.5
    %v356 = vsel %vm348, %v324, %v340
    %v357 = vsel %vm349, %v325, %v341
    %v358 = vsel %vm350, %v326, %v342
    %v359 = vsel %vm351, %v327, %v343
    %v360 = vsel %vm352, %v328, %v344
    %v361 = vsel %vm353, %v329, %v345
    %v362 = vsel %vm354, %v330, %v346
    %v363 = vsel %vm355, %v331, %v347
    %364 = vst [vmem:[#allocation7] sm:$0xff] %v356
    %365 = vst [vmem:[#allocation7 + $0x8] sm:$0xff] %v357
    %366 = vst [vmem:[#allocation7 + $0x10] sm:$0xff] %v358
    %367 = vst [vmem:[#allocation7 + $0x18] sm:$0xff] %v359
    %368 = vst [vmem:[#allocation7 + $0x20] sm:$0xff] %v360
    %369 = vst [vmem:[#allocation7 + $0x28] sm:$0xff] %v361
    %370 = vst [vmem:[#allocation7 + $0x30] sm:$0xff] %v362
    %371 = vst [vmem:[#allocation7 + $0x38] sm:$0xff] %v363
    // Predicated region
    $region18: #{tpu_custom_call.1} parent=1 // pred_check
      _
    $region19: #{tpu_custom_call.1} parent=1 // pred_check_branch
      %373 = sbr.rel (0) target = $region21
    $region20: #{tpu_custom_call.1} parent=1 // pred_region
      %s375 = ssub.s32 1024, 1024
      %376 = vsyncadd [#allocation4], %s375
      %s378 = sshll.u32 [#allocation7], 4
      %s379 = int_to_ptr.vmem [resolvable:$true] %s378
      %381 = dma.vmem_to_hbm [thread:$0]  %s379, 1024, %s2, [#allocation4]
    $region21: #{tpu_custom_call.1} parent=1 // pred_fallthru
      _
    // Predicated region
    $region22: #{tpu_custom_call.1} parent=1 // pred_check
      _
    $region23: #{tpu_custom_call.1} parent=1 // pred_check_branch
      %383 = sbr.rel (0) target = $region25
    $region24: #{tpu_custom_call.1} parent=1 // pred_region
      %384 = dma.done [#allocation4], 1024
    $region25: #{tpu_custom_call.1} parent=1 // pred_fallthru
      _
    %385 = vsyncpa [#allocation3], 1
    %386 = vsyncpa [#allocation6], 1
    %387 = vsyncpa [#allocation4], 1

</llo_original>
